<compile_context>
chip_gen: v7x
topology: tpu7x:2x2x1
jax: 0.10.0
libtpu: 0.0.40
codegen_flags: <defaults>
</compile_context>

<pallas_src>
import jax
import jax.numpy as jnp
from jax.experimental import pallas as pl
from jax.experimental.pallas import tpu as pltpu


def _round_up(a, b):
    return (a + b - 1) // b * b


def _vmem_capacity_bytes():
    # Chip-aware VMEM capacity; conservative 64 MiB fallback (safe on v7x too).
    try:
        return int(pltpu.get_tpu_info().vmem_capacity_bytes)
    except Exception:
        return 64 * 1024 * 1024


def _steer_kernel(x_ref, v_ref, o_ref):
    # x_ref / o_ref: (TM, D) token tile in VMEM (ragged tail block is masked
    #                by Pallas on load/store).
    # v_ref:         (1, D) alpha-pre-scaled steering vector; constant
    #                index_map keeps it resident across grid steps.
    o_ref[...] = x_ref[...] + v_ref[...]


def _steer_impl(x, steer_vec, alpha):
    B, S, D = x.shape
    dtype = x.dtype
    itemsize = jnp.dtype(dtype).itemsize
    # Sublane packing multiple for the row (second-minor) axis.
    sublane = {4: 8, 2: 16, 1: 32}.get(itemsize, 8)

    # Fold alpha into the steering vector in f32 (one tiny XLA op).
    # Note: one extra rounding of alpha*v for sub-f32 dtypes vs. an f32
    # broadcast-add; negligible for steering magnitudes.
    v_scaled = (steer_vec.astype(jnp.float32) * alpha).astype(dtype).reshape(1, D)

    # Token-major flattening: rows = tokens, lanes = hidden dim.  No padding:
    # block last dim == full D (exempt from the 128 rule), ragged tail rows
    # are handled by Pallas store masking.
    N = B * S
    x_flat = x.reshape(N, D)

    # ---- Tile sizing ---------------------------------------------------
    vmem_cap = _vmem_capacity_bytes()
    pipeline_budget = (vmem_cap * 3) // 8           # 2 in + 2 out double buffers
    tm_cap = max(
        sublane,
        (pipeline_budget // (4 * D * itemsize)) // sublane * sublane,
    )
    # Guarantee >=4 grid steps when N allows it (shards across v7x's 2 TCs
    # and keeps double-buffering alive on each core).
    tm_parallel = _round_up(pl.cdiv(N, 4), sublane)
    TM = max(sublane, min(1024, tm_cap, tm_parallel))

    grid = (pl.cdiv(N, TM),)

    # Size the scoped-VMEM limit to actual need (4 x-tiles + v) plus slack.
    vmem_need = 4 * TM * D * itemsize + 2 * D * itemsize
    vmem_limit = min(
        max(vmem_need + (4 << 20), 16 << 20),
        max(vmem_cap - (8 << 20), 16 << 20),
    )

    out = pl.pallas_call(
        _steer_kernel,
        out_shape=jax.ShapeDtypeStruct((N, D), dtype),
        grid=grid,
        in_specs=[
            pl.BlockSpec((TM, D), lambda i: (i, 0)),   # x token tile
            pl.BlockSpec((1, D), lambda i: (0, 0)),    # steering vector (resident)
        ],
        out_specs=pl.BlockSpec((TM, D), lambda i: (i, 0)),
        compiler_params=pltpu.CompilerParams(
            dimension_semantics=("parallel",),
            vmem_limit_bytes=int(vmem_limit),
        ),
        cost_estimate=pl.CostEstimate(
            flops=N * D,
            transcendentals=0,
            bytes_accessed=2 * N * D * itemsize + D * itemsize,
        ),
    )(x_flat, v_scaled)

    return out.reshape(B, S, D)


# jit so the reshape / alpha-fold fuse around the kernel.
embedding_steer = jax.jit(_steer_impl)


if __name__ == "__main__":
    # Small shapes consistent with an embedding-steering forward pass.
    B, S, D = 2, 8, 128
    key = jax.random.PRNGKey(0)
    kx, kv = jax.random.split(key)

    x = jax.random.normal(kx, (B, S, D), dtype=jnp.float32)
    # Deterministic "learned" steering vector (synthetic init, not a checkpoint).
    steer_vec = jax.random.normal(kv, (D,), dtype=jnp.float32)
    alpha = 0.5

    out = embedding_steer(x, steer_vec, alpha)
    out = jax.block_until_ready(out)

    # Reference check in plain JAX.
    ref = x + alpha * steer_vec[None, None, :]
    assert out.shape == (B, S, D)
    assert jnp.allclose(out, ref, atol=1e-6), "mismatch vs reference"

    print("KERNEL_OK")
</pallas_src>

<mosaic_0001>
module attributes {stable_mosaic.version = 11 : i64} {
  func.func @_steer_kernel(%arg0: i32, %arg1: memref<8x128xf32, #tpu.memory_space<vmem>>, %arg2: memref<1x128xf32, #tpu.memory_space<vmem>>, %arg3: memref<8x128xf32, #tpu.memory_space<vmem>>) attributes {dimension_semantics = [#tpu.dimension_semantics<parallel>], iteration_bounds = array<i64: 2>, scalar_prefetch = 0 : i64, scratch_operands = 0 : i64, tpu.core_type = #tpu.core_type<tc>, window_params = [{transform_indices = @transform_0, window_bounds = array<i64: 8, 128>}, {pipeline_mode = #tpu.pipeline_mode<synchronous>, transform_indices = @transform_1, window_bounds = array<i64: 1, 128>}, {transform_indices = @transform_2, window_bounds = array<i64: 8, 128>}]} {
    %c0 = arith.constant 0 : index
    %c0_0 = arith.constant 0 : index
    %0 = vector.load %arg1[%c0, %c0_0] : memref<8x128xf32, #tpu.memory_space<vmem>>, vector<8x128xf32>
    %c0_1 = arith.constant 0 : index
    %c0_2 = arith.constant 0 : index
    %1 = vector.load %arg2[%c0_1, %c0_2] : memref<1x128xf32, #tpu.memory_space<vmem>>, vector<1x128xf32>
    %2 = vector.broadcast %1 : vector<1x128xf32> to vector<8x128xf32>
    %3 = arith.addf %0, %2 : vector<8x128xf32>
    %c0_3 = arith.constant 0 : index
    %c0_4 = arith.constant 0 : index
    %4 = vector.load %arg3[%c0_3, %c0_4] : memref<8x128xf32, #tpu.memory_space<vmem>>, vector<8x128xf32>
    tpu.vector_store %arg3[%c0_3, %c0_4], %3 {strides = array<i32>} : memref<8x128xf32, #tpu.memory_space<vmem>>, vector<8x128xf32>,
    return
  }
  func.func @transform_0(%arg0: i32) -> (i32, i32) {
    %c0_i32 = arith.constant 0 : i32
    %c0_i32_0 = arith.constant 0 : i32
    return %arg0, %c0_i32 : i32, i32
  }
  func.func @transform_1(%arg0: i32) -> (i32, i32) {
    %c0_i32 = arith.constant 0 : i32
    %c0_i32_0 = arith.constant 0 : i32
    %c0_i32_1 = arith.constant 0 : i32
    return %c0_i32, %c0_i32_0 : i32, i32
  }
  func.func @transform_2(%arg0: i32) -> (i32, i32) {
    %c0_i32 = arith.constant 0 : i32
    %c0_i32_0 = arith.constant 0 : i32
    return %arg0, %c0_i32 : i32, i32
  }
}

</mosaic_0001>

<llo_original>
// kernel: _steer_impl.1
$region0: #{_steer_impl.1}
  #allocation0 [shape = 'u32[]', space=smem, size = 0x4, offset = 0x4, fixed_abs, tag = 'smem constant byte address 0x4 - core index']
  #allocation1 [shape = 'u32[144,128]{1,0:T(1,128)}', space=vmem, size = 0x12000, scoped, tag = 'internal scratch']
  %s0 = inlined_call_operand.hbm [shape: f32[16,128], index: 0, kind: input, shape index: {}]
  %s1 = inlined_call_operand.vmem [shape: f32[1,128], index: 1, kind: input, shape index: {}]
  %s2 = inlined_call_operand.hbm [shape: f32[16,128], index: 2, kind: output, shape index: {}]
  %s3 = sld [smem:[#allocation0]]
  $region45: #{_steer_impl.1} parent=0
    _
  %s5 = ssub.s32 1, %s3
  %s6 = scalar_select 0, %s5, %s3
  $region1: #{_steer_impl.1} parent=0
    #allocation2 [shape = 'u8[8192]{0}', space=vmem, size = 0x2000, scoped, tag = 'input window, operand 0']
    #allocation3 [shape = 's32[2]{0}', space=sflag, size = 0x8, scoped, tag = 'scoped memory for _steer_impl.1']
    #allocation4 [shape = 's32[2]{0}', space=sflag, size = 0x8, scoped, tag = 'scoped memory for _steer_impl.1']
    #allocation5 [shape = 'u8[8192]{0}', space=vmem, size = 0x2000, scoped, tag = 'output window, operand 0']
    %7 = vsyncpa [#allocation3], 0
    %s8 = scalar_lea.sflag [#allocation3], 1
    %9 = vsyncpa %s8, 0
    %10 = vsyncpa [#allocation4], 0
    %s11 = scalar_lea.sflag [#allocation4], 1
    %12 = vsyncpa %s11, 0
    loop: start=0, step=1, limit=4
    $region2: #{_steer_impl.1} parent=1 // loop_pre_header
      _
    $region3: #{_steer_impl.1} parent=1 // loop_header
      %s14 = sphi 0, %s18
      %p15 = scmp.ge.s32.totalorder %s14, 4
      %s24 = sphi 0, %s26
      %s27 = sphi 0, %s24
      %s28 = sphi 0, %s27
      %s44 = sphi 0, %s28
      %s48 = sphi 0, %s48
      %s50 = sphi 0, %s48
      %s51 = sphi 0, %s50
      %s65 = sphi 0, %s51
      %s71 = sphi 0, %s73
      %s74 = sphi 0, %s71
      %s75 = sphi 0, %s74
      %s91 = sphi 0, %s75
    $region4: #{_steer_impl.1} parent=1 // loop_header_branch
      %17 = sbr.rel (%p15) target = $region8
    $region5: #{_steer_impl.1} parent=1 // loop_body
      %s19 = ssub.s32 %s14, 1
      %s20 = ssub.s32 %s14, 2
      %s21 = sadd.s32 %s14, 1
      %s22 = ssub.s32 %s14, %s21
      %p23 = scmp.eq.s32.totalorder %s22, 0
      %s25 = sadd.s32 %s24, 1
      %s26 = scalar_select %p23, %s24, %s25
      %p29 = pneg %p23
      %p30 = scmp.eq.s32.totalorder %s14, 1
      %p31 = por %p29, %p30
      %p32 = scmp.ne.s32.totalorder %s24, %s27
      %p33 = scmp.eq.s32.totalorder %s14, 0
      %p34 = por %p32, %p33
      %p35 = scmp.ne.s32.totalorder %s24, %s27
      %p36 = scmp.eq.s32.totalorder %s19, 1
      %p37 = por %p35, %p36
      %p38 = scmp.ne.s32.totalorder %s27, %s28
      %p39 = scmp.eq.s32.totalorder %s19, 0
      %p40 = por %p38, %p39
      %p41 = scmp.ne.s32.totalorder %s27, %s28
      %p42 = scmp.eq.s32.totalorder %s20, 1
      %p43 = por %p41, %p42
      %p45 = scmp.ne.s32.totalorder %s28, %s44
      %p46 = scmp.eq.s32.totalorder %s20, 0
      %p47 = por %p45, %p46
      %s49 = sadd.s32 %s48, 1
      %p52 = scmp.eq.s32.totalorder %s14, 1
      %p53 = scmp.ne.s32.totalorder %s48, %s50
      %p54 = scmp.eq.s32.totalorder %s14, 0
      %p55 = por %p53, %p54
      %p56 = scmp.ne.s32.totalorder %s48, %s50
      %p57 = scmp.eq.s32.totalorder %s19, 1
      %p58 = por %p56, %p57
      %p59 = scmp.ne.s32.totalorder %s50, %s51
      %p60 = scmp.eq.s32.totalorder %s19, 0
      %p61 = por %p59, %p60
      %p62 = scmp.ne.s32.totalorder %s50, %s51
      %p63 = scmp.eq.s32.totalorder %s20, 1
      %p64 = por %p62, %p63
      %p66 = scmp.ne.s32.totalorder %s51, %s65
      %p67 = scmp.eq.s32.totalorder %s20, 0
      %p68 = por %p66, %p67
      %s69 = ssub.s32 %s14, %s21
      %p70 = scmp.eq.s32.totalorder %s69, 0
      %s72 = sadd.s32 %s71, 1
      %s73 = scalar_select %p70, %s71, %s72
      %p76 = pneg %p70
      %p77 = scmp.eq.s32.totalorder %s14, 1
      %p78 = por %p76, %p77
      %p79 = scmp.ne.s32.totalorder %s71, %s74
      %p80 = scmp.eq.s32.totalorder %s14, 0
      %p81 = por %p79, %p80
      %p82 = scmp.ne.s32.totalorder %s71, %s74
      %p83 = scmp.eq.s32.totalorder %s19, 1
      %p84 = por %p82, %p83
      %p85 = scmp.ne.s32.totalorder %s74, %s75
      %p86 = scmp.eq.s32.totalorder %s19, 0
      %p87 = por %p85, %p86
      %p88 = scmp.ne.s32.totalorder %s74, %s75
      %p89 = scmp.eq.s32.totalorder %s20, 1
      %p90 = por %p88, %p89
      %p92 = scmp.ne.s32.totalorder %s75, %s91
      %p93 = scmp.eq.s32.totalorder %s20, 0
      %p94 = por %p92, %p93
      %p95 = scmp.le.s32.totalorder 1, %s14
      %p96 = scmp.lt.s32.totalorder %s14, 3
      %p97 = pnand %p95, %p96
      %p98 = pneg %p97
      // Predicated region
      $region9: #{_steer_impl.1} parent=5 // pred_check
        _
      $region10: #{_steer_impl.1} parent=5 // pred_check_branch
        %100 = sbr.rel (%p97) target = $region12
      $region11: #{_steer_impl.1} parent=5 // pred_region
        %s101 = ssub.s32 %s14, 1
        // Predicated region
        $region13: #{_steer_impl.1} parent=11 // pred_check
          %p102 = pneg %p61
        $region14: #{_steer_impl.1} parent=11 // pred_check_branch
          %104 = sbr.rel (%p102) target = $region16
        $region15: #{_steer_impl.1} parent=11 // pred_region
          _
        $region16: #{_steer_impl.1} parent=11 // pred_fallthru
          _
      $region12: #{_steer_impl.1} parent=5 // pred_fallthru
        _
      %p105 = scmp.lt.s32.totalorder %s14, 2
      // Predicated region
      $region17: #{_steer_impl.1} parent=5 // pred_check
        %p106 = pneg %p105
      $region18: #{_steer_impl.1} parent=5 // pred_check_branch
        %108 = sbr.rel (%p106) target = $region20
      $region19: #{_steer_impl.1} parent=5 // pred_region
        // Predicated region
        $region21: #{_steer_impl.1} parent=19 // pred_check
          %p109 = pneg %p34
        $region22: #{_steer_impl.1} parent=19 // pred_check_branch
          %111 = sbr.rel (%p109) target = $region24
        $region23: #{_steer_impl.1} parent=19 // pred_region
          %s112 = sand.u32 %s24, 1
          %s113 = scalar_lea.sflag [#allocation3], %s112
          %s114 = sand.u32 %s24, 1
          %s115 = smul.addr %s114, 8
          %s116 = scalar_lea.vmem [#allocation2], %s115
          %s118 = ssub.s32 128, 128
          %119 = vsyncadd %s113, %s118
          %s120 = smul.addr %s14, 128
          %s121 = scalar_lea.hbm %s0, %s120
          %s123 = sshll.u32 %s116, 4
          %s124 = int_to_ptr.vmem [resolvable:$true] %s123
          %126 = dma.hbm_to_vmem [thread:$0]  %s121, 128, %s124, %s113
        $region24: #{_steer_impl.1} parent=19 // pred_fallthru
          _
      $region20: #{_steer_impl.1} parent=5 // pred_fallthru
        _
      %p127 = scmp.le.s32.totalorder 1, %s14
      %p128 = scmp.lt.s32.totalorder %s14, 3
      %p129 = pnand %p127, %p128
      %p130 = pneg %p129
      // Predicated region
      $region25: #{_steer_impl.1} parent=5 // pred_check
        _
      $region26: #{_steer_impl.1} parent=5 // pred_check_branch
        %132 = sbr.rel (%p129) target = $region28
      $region27: #{_steer_impl.1} parent=5 // pred_region
        %s133 = ssub.s32 %s14, 1
        %s134 = sand.u32 %s27, 1
        %s135 = scalar_lea.sflag [#allocation3], %s134
        %s136 = sand.u32 %s27, 1
        %s137 = smul.addr %s136, 8
        %s138 = scalar_lea.vmem [#allocation2], %s137
        // Predicated region
        $region29: #{_steer_impl.1} parent=27 // pred_check
          %p139 = pneg %p40
        $region30: #{_steer_impl.1} parent=27 // pred_check_branch
          %141 = sbr.rel (%p139) target = $region32
        $region31: #{_steer_impl.1} parent=27 // pred_region
          %142 = dma.done %s135, 128
        $region32: #{_steer_impl.1} parent=27 // pred_fallthru
          _
        %s143 = sand.u32 %s27, 1
        %s144 = scalar_lea.sflag [#allocation3], %s143
        %s145 = sand.u32 %s27, 1
        %s146 = smul.addr %s145, 8
        %s147 = scalar_lea.vmem [#allocation2], %s146
        %p148 = pneg %p40
        %p149 = pneg %p37
        %p150 = pneg %p61
        %p151 = pneg %p58
        %p152 = pneg %p87
        %p153 = pneg %p84
        %s154 = sand.u32 %s74, 1
        %s155 = scalar_lea.sflag [#allocation4], %s154
        %s156 = sand.u32 %s74, 1
        %s157 = smul.addr %s156, 8
        %s158 = scalar_lea.vmem [#allocation5], %s157
        %v159 = vld [vmem:[%s138] sm:$0xff]
        %v160 = vld [vmem:[%s1] sm:$0x1]
        %v162 = vlaneseq
        %v163 = vshrl.u32 %v162, 7
        %v164 = vsub.s32 0, %v163
        %v165 = vrot.slane %v160, %v164
        %v167 = vadd.f32 %v159, %v165
        %168 = vst [vmem:[%s158] sm:$0xff] %v167
        %s169 = sand.u32 %s74, 1
        %s170 = scalar_lea.sflag [#allocation4], %s169
        %s171 = sand.u32 %s74, 1
        %s172 = smul.addr %s171, 8
        %s173 = scalar_lea.vmem [#allocation5], %s172
        // Predicated region
        $region33: #{_steer_impl.1} parent=27 // pred_check
          %p174 = pneg %p84
        $region34: #{_steer_impl.1} parent=27 // pred_check_branch
          %176 = sbr.rel (%p174) target = $region36
        $region35: #{_steer_impl.1} parent=27 // pred_region
          %s178 = ssub.s32 128, 128
          %179 = vsyncadd %s170, %s178
          %s180 = smul.addr %s19, 128
          %s181 = scalar_lea.hbm %s2, %s180
          %s183 = sshll.u32 %s173, 4
          %s184 = int_to_ptr.vmem [resolvable:$true] %s183
          %186 = dma.vmem_to_hbm [thread:$0]  %s184, 128, %s181, %s170
        $region36: #{_steer_impl.1} parent=27 // pred_fallthru
          _
      $region28: #{_steer_impl.1} parent=5 // pred_fallthru
        _
      %p187 = scmp.le.s32.totalorder 2, %s14
      // Predicated region
      $region37: #{_steer_impl.1} parent=5 // pred_check
        %p188 = pneg %p187
      $region38: #{_steer_impl.1} parent=5 // pred_check_branch
        %190 = sbr.rel (%p188) target = $region40
      $region39: #{_steer_impl.1} parent=5 // pred_region
        %s191 = ssub.s32 %s14, 2
        // Predicated region
        $region41: #{_steer_impl.1} parent=39 // pred_check
          %p192 = pneg %p90
        $region42: #{_steer_impl.1} parent=39 // pred_check_branch
          %194 = sbr.rel (%p192) target = $region44
        $region43: #{_steer_impl.1} parent=39 // pred_region
          %s195 = sand.u32 %s75, 1
          %s196 = scalar_lea.sflag [#allocation4], %s195
          %s197 = sand.u32 %s75, 1
          %s198 = smul.addr %s197, 8
          %s199 = scalar_lea.vmem [#allocation5], %s198
          %200 = dma.done %s196, 128
        $region44: #{_steer_impl.1} parent=39 // pred_fallthru
          _
      $region40: #{_steer_impl.1} parent=5 // pred_fallthru
        _
    $region6: #{_steer_impl.1} parent=1 // loop_footer
      %s18 = sadd.s32 1, %s14
    $region7: #{_steer_impl.1} parent=1 // loop_footer_branch
      %13 = sbr.rel target = $region3
    $region8: #{_steer_impl.1} parent=1 // loop_exit
      _
    %201 = vsyncpa [#allocation3], 1
    %s202 = scalar_lea.sflag [#allocation3], 1
    %203 = vsyncpa %s202, 1
    %204 = vsyncpa [#allocation4], 1
    %s205 = scalar_lea.sflag [#allocation4], 1
    %206 = vsyncpa %s205, 1

</llo_original>
